<compile_context>
chip_gen: v7x
topology: tpu7x:2x2x1
jax: 0.10.0
libtpu: 0.0.40
codegen_flags: <defaults>
</compile_context>

<pallas_src>
import jax
import jax.numpy as jnp
from jax.experimental import pallas as pl
from jax.experimental.pallas import tpu as pltpu

LATENT_DIM = 15
H1 = 512
H2 = 256
OUT = 1
NEG_SLOPE = 0.01          # PyTorch nn.LeakyReLU default
MAX_TILE_B = 2048         # VMEM-safe ceiling per grid step (v7x: 64 MiB physical)


def _leaky_relu(x):
    return jnp.where(x > 0, x, NEG_SLOPE * x)


def _round_up(n, m):
    return ((n + m - 1) // m) * m


def _cdiv(a, b):
    return (a + b - 1) // b


def _choose_tile_b(B, max_tile=MAX_TILE_B):
    """Batch tile: multiple of 16 (bf16 sublane packing), scales with B, and for
    batches >= 512 guarantees a grid of >= 2 steps so the 'parallel' axis can
    shard across v7x's two TensorCores."""
    b16 = _round_up(max(B, 1), 16)
    if b16 < 512:
        return b16                       # one small tile; splitting adds only overhead
    tile = _round_up(_cdiv(b16, 2), 256)  # >= 2 grid steps, MXU-friendly multiple of 256
    return min(tile, max_tile)


def _make_kernel(act_dtype):
    def discriminator_kernel(x_ref, w1_ref, b1_ref, w2_ref, b2_ref, w3_ref, b3_ref,
                             o_ref):
        # x tile arrives f32; cast to bf16 in-kernel (VPU slot, hidden under the MXU).
        x = x_ref[...].astype(jnp.bfloat16)

        # Layer 1: K=15 is one padded MXU K-pass; bf16 operands, f32 accumulate,
        # then bias + LeakyReLU in the (bf16) activation dtype.
        h1 = jnp.dot(x, w1_ref[...], preferred_element_type=jnp.float32)
        h1 = _leaky_relu(h1.astype(act_dtype) + b1_ref[...])

        # Layer 2: 512x256 MXU, f32 accumulate, bf16 activations.
        h2 = jnp.dot(h1.astype(jnp.bfloat16), w2_ref[...],
                     preferred_element_type=jnp.float32)
        h2 = _leaky_relu(h2.astype(act_dtype) + b2_ref[...])

        # Layer 3 (N=1): keep off the MXU — elementwise multiply in act dtype (VPU),
        # lane reduce in f32 (XLU), bias + sigmoid in f32.
        prod = (h2 * w3_ref[...]).astype(jnp.float32)
        logits = jnp.sum(prod, axis=-1, keepdims=True) + b3_ref[...]
        o_ref[...] = jax.nn.sigmoid(logits)

    return discriminator_kernel


def discriminator_forward(x, params, *, tile_b=None, bf16_activations=True):
    """x: (B, LATENT_DIM) f32.  Returns (B, 1) f32 probabilities.

    bf16_activations: keep True on v6e/v7x (bf16 VALU); set False on v5e to avoid
    bf16 pack/unpack on the VPU (MXU operands stay bf16 either way).
    """
    w1, b1, w2, b2, w3, b3 = params
    B = x.shape[0]

    act_dtype = jnp.bfloat16 if bf16_activations else jnp.float32

    if tile_b is None:
        tile_b = _choose_tile_b(B)
    tile_b = min(tile_b, _round_up(B, 16))
    b_pad = _round_up(B, tile_b)
    if b_pad != B:
        x = jnp.pad(x, ((0, b_pad - B), (0, 0)))
    x = x.astype(jnp.float32)            # x stays f32; bf16 cast happens in-kernel

    # MXU operands in bf16; biases / layer-3 weight row in the activation dtype.
    w1_bf = w1.astype(jnp.bfloat16)
    w2_bf = w2.astype(jnp.bfloat16)
    b1_a = b1.reshape(1, H1).astype(act_dtype)
    b2_a = b2.reshape(1, H2).astype(act_dtype)
    w3_a = w3.reshape(1, H2).astype(act_dtype)
    b3_2d = b3.reshape(1, OUT).astype(jnp.float32)

    grid = (b_pad // tile_b,)

    flops = 2 * b_pad * (LATENT_DIM * H1 + H1 * H2 + H2)
    bytes_accessed = (
        b_pad * LATENT_DIM * 4                     # x (f32)
        + w1_bf.size * 2 + w2_bf.size * 2          # MXU weights (bf16)
        + (b1_a.size + b2_a.size + w3_a.size) * act_dtype.dtype.itemsize
        + b3_2d.size * 4
        + b_pad * OUT * 4                          # output
    )

    # Weights/biases: full-array block, constant index_map -> VMEM-resident across steps.
    const = lambda a: pl.BlockSpec(a.shape, lambda i: (0,) * a.ndim)

    out = pl.pallas_call(
        _make_kernel(act_dtype),
        out_shape=jax.ShapeDtypeStruct((b_pad, OUT), jnp.float32),
        grid_spec=pltpu.PrefetchScalarGridSpec(
            num_scalar_prefetch=0,
            grid=grid,
            in_specs=[
                pl.BlockSpec((tile_b, LATENT_DIM), lambda i: (i, 0)),  # x tile (f32)
                const(w1_bf), const(b1_a),
                const(w2_bf), const(b2_a),
                const(w3_a), const(b3_2d),
            ],
            out_specs=pl.BlockSpec((tile_b, OUT), lambda i: (i, 0)),
        ),
        compiler_params=pltpu.CompilerParams(
            dimension_semantics=("parallel",),
            # Explicit limit: clears v5e's 16 MiB scoped default at TILE_B=2048
            # while leaving headroom under v7x's 64 MiB physical VMEM.
            vmem_limit_bytes=48 * 1024 * 1024,
        ),
        cost_estimate=pl.CostEstimate(
            flops=flops, transcendentals=b_pad, bytes_accessed=bytes_accessed),
    )(x, w1_bf, b1_a, w2_bf, b2_a, w3_a, b3_2d)

    return out[:B]


def init_params(key):
    """Deterministic init mimicking PyTorch Linear default (U[-1/sqrt(fan_in), +])."""
    ks = jax.random.split(key, 6)

    def lin(kw, kb, fan_in, fan_out):
        bound = 1.0 / jnp.sqrt(jnp.asarray(fan_in, jnp.float32))
        w = jax.random.uniform(kw, (fan_in, fan_out), jnp.float32, -bound, bound)
        b = jax.random.uniform(kb, (1, fan_out), jnp.float32, -bound, bound)
        return w, b

    w1, b1 = lin(ks[0], ks[1], LATENT_DIM, H1)
    w2, b2 = lin(ks[2], ks[3], H1, H2)
    w3, b3 = lin(ks[4], ks[5], H2, OUT)
    return (w1, b1, w2, b2, w3, b3)


def reference_forward(x, params):
    w1, b1, w2, b2, w3, b3 = params
    h1 = _leaky_relu(x @ w1 + b1)
    h2 = _leaky_relu(h1 @ w2 + b2)
    return jax.nn.sigmoid(h2 @ w3 + b3)


if __name__ == "__main__":
    key = jax.random.PRNGKey(0)
    kx, kx2, kx3, kp = jax.random.split(key, 4)
    params = init_params(kp)

    # Small-shape test (B=2): single grid step, padded to one 16-row tile.
    B = 2
    x = jax.random.normal(kx, (B, LATENT_DIM), jnp.float32)
    out = jax.block_until_ready(discriminator_forward(x, params))
    ref = reference_forward(x, params)
    assert out.shape == (B, OUT), out.shape
    # bf16 MXU operands / activations with f32 accumulation -> loosened tolerance.
    assert jnp.allclose(out, ref, atol=2e-2, rtol=2e-2), (out, ref)

    # Medium batch: tile 512, 2-step grid (exercises the >=2-step / dual-TC path).
    B2 = 600
    x2 = jax.random.normal(kx2, (B2, LATENT_DIM), jnp.float32)
    out2 = jax.block_until_ready(discriminator_forward(x2, params))
    ref2 = reference_forward(x2, params)
    assert out2.shape == (B2, OUT), out2.shape
    assert jnp.allclose(out2, ref2, atol=2e-2, rtol=2e-2)

    # Larger batch: hits the MAX_TILE_B=2048 cap, multi-step grid with padding.
    B3 = 5000
    x3 = jax.random.normal(kx3, (B3, LATENT_DIM), jnp.float32)
    out3 = jax.block_until_ready(discriminator_forward(x3, params))
    ref3 = reference_forward(x3, params)
    assert out3.shape == (B3, OUT), out3.shape
    assert jnp.allclose(out3, ref3, atol=2e-2, rtol=2e-2)

    print("KERNEL_OK")
</pallas_src>

<mosaic_0001>
module attributes {stable_mosaic.version = 11 : i64} {
  func.func @discriminator_kernel(%arg0: i32, %arg1: memref<16x15xf32, #tpu.memory_space<vmem>>, %arg2: memref<15x512xbf16, #tpu.memory_space<vmem>>, %arg3: memref<1x512xbf16, #tpu.memory_space<vmem>>, %arg4: memref<512x256xbf16, #tpu.memory_space<vmem>>, %arg5: memref<1x256xbf16, #tpu.memory_space<vmem>>, %arg6: memref<1x256xbf16, #tpu.memory_space<vmem>>, %arg7: memref<1x1xf32, #tpu.memory_space<vmem>>, %arg8: memref<16x1xf32, #tpu.memory_space<vmem>>) attributes {dimension_semantics = [#tpu.dimension_semantics<parallel>], iteration_bounds = array<i64: 1>, scalar_prefetch = 0 : i64, scratch_operands = 0 : i64, tpu.core_type = #tpu.core_type<tc>, window_params = [{transform_indices = @transform_0, window_bounds = array<i64: 16, 15>}, {pipeline_mode = #tpu.pipeline_mode<synchronous>, transform_indices = @transform_1, window_bounds = array<i64: 15, 512>}, {pipeline_mode = #tpu.pipeline_mode<synchronous>, transform_indices = @transform_2, window_bounds = array<i64: 1, 512>}, {pipeline_mode = #tpu.pipeline_mode<synchronous>, transform_indices = @transform_3, window_bounds = array<i64: 512, 256>}, {pipeline_mode = #tpu.pipeline_mode<synchronous>, transform_indices = @transform_4, window_bounds = array<i64: 1, 256>}, {pipeline_mode = #tpu.pipeline_mode<synchronous>, transform_indices = @transform_5, window_bounds = array<i64: 1, 256>}, {pipeline_mode = #tpu.pipeline_mode<synchronous>, transform_indices = @transform_6, window_bounds = array<i64: 1, 1>}, {transform_indices = @transform_7, window_bounds = array<i64: 16, 1>}]} {
    %c0 = arith.constant 0 : index
    %c0_0 = arith.constant 0 : index
    %0 = vector.load %arg1[%c0, %c0_0] : memref<16x15xf32, #tpu.memory_space<vmem>>, vector<16x15xf32>
    %1 = arith.truncf %0 : vector<16x15xf32> to vector<16x15xbf16>
    %c0_1 = arith.constant 0 : index
    %c0_2 = arith.constant 0 : index
    %2 = vector.load %arg2[%c0_1, %c0_2] : memref<15x512xbf16, #tpu.memory_space<vmem>>, vector<15x512xbf16>
    %cst = arith.constant dense<0.000000e+00> : vector<16x512xf32>
    %3 = tpu.matmul %1, %2, %cst {dimension_numbers = #tpu.dot_dimension_numbers<[1], [0], [0], [1], [0, 0, 1, 1], [], []>} : vector<16x15xbf16>, vector<15x512xbf16>, vector<16x512xf32> -> vector<16x512xf32>
    %4 = arith.truncf %3 : vector<16x512xf32> to vector<16x512xbf16>
    %c0_3 = arith.constant 0 : index
    %c0_4 = arith.constant 0 : index
    %5 = vector.load %arg3[%c0_3, %c0_4] : memref<1x512xbf16, #tpu.memory_space<vmem>>, vector<1x512xbf16>
    %6 = vector.broadcast %5 : vector<1x512xbf16> to vector<16x512xbf16>
    %7 = arith.addf %4, %6 : vector<16x512xbf16>
    %cst_5 = arith.constant 0.000000e+00 : bf16
    %8 = vector.broadcast %cst_5 : bf16 to vector<16x512xbf16>
    %9 = arith.cmpf ogt, %7, %8 : vector<16x512xbf16>
    %cst_6 = arith.constant 1.000980e-02 : bf16
    %10 = vector.broadcast %cst_6 : bf16 to vector<16x512xbf16>
    %11 = arith.mulf %10, %7 : vector<16x512xbf16>
    %12 = arith.select %9, %7, %11 : vector<16x512xi1>, vector<16x512xbf16>
    %c0_7 = arith.constant 0 : index
    %c0_8 = arith.constant 0 : index
    %13 = vector.load %arg4[%c0_7, %c0_8] : memref<512x256xbf16, #tpu.memory_space<vmem>>, vector<512x256xbf16>
    %cst_9 = arith.constant dense<0.000000e+00> : vector<16x256xf32>
    %14 = tpu.matmul %12, %13, %cst_9 {dimension_numbers = #tpu.dot_dimension_numbers<[1], [0], [0], [1], [0, 0, 1, 1], [], []>} : vector<16x512xbf16>, vector<512x256xbf16>, vector<16x256xf32> -> vector<16x256xf32>
    %15 = arith.truncf %14 : vector<16x256xf32> to vector<16x256xbf16>
    %c0_10 = arith.constant 0 : index
    %c0_11 = arith.constant 0 : index
    %16 = vector.load %arg5[%c0_10, %c0_11] : memref<1x256xbf16, #tpu.memory_space<vmem>>, vector<1x256xbf16>
    %17 = vector.broadcast %16 : vector<1x256xbf16> to vector<16x256xbf16>
    %18 = arith.addf %15, %17 : vector<16x256xbf16>
    %cst_12 = arith.constant 0.000000e+00 : bf16
    %19 = vector.broadcast %cst_12 : bf16 to vector<16x256xbf16>
    %20 = arith.cmpf ogt, %18, %19 : vector<16x256xbf16>
    %cst_13 = arith.constant 1.000980e-02 : bf16
    %21 = vector.broadcast %cst_13 : bf16 to vector<16x256xbf16>
    %22 = arith.mulf %21, %18 : vector<16x256xbf16>
    %23 = arith.select %20, %18, %22 : vector<16x256xi1>, vector<16x256xbf16>
    %c0_14 = arith.constant 0 : index
    %c0_15 = arith.constant 0 : index
    %24 = vector.load %arg6[%c0_14, %c0_15] : memref<1x256xbf16, #tpu.memory_space<vmem>>, vector<1x256xbf16>
    %25 = vector.broadcast %24 : vector<1x256xbf16> to vector<16x256xbf16>
    %26 = arith.mulf %23, %25 : vector<16x256xbf16>
    %27 = arith.extf %26 : vector<16x256xbf16> to vector<16x256xf32>
    %cst_16 = arith.constant dense<0.000000e+00> : vector<16xf32>
    %28 = vector.multi_reduction <add>, %27, %cst_16 [1] : vector<16x256xf32> to vector<16xf32>
    %29 = vector.shape_cast %28 : vector<16xf32> to vector<16x1xf32>
    %c0_17 = arith.constant 0 : index
    %c0_18 = arith.constant 0 : index
    %30 = vector.load %arg7[%c0_17, %c0_18] : memref<1x1xf32, #tpu.memory_space<vmem>>, vector<1x1xf32>
    %31 = vector.broadcast %30 : vector<1x1xf32> to vector<16x1xf32>
    %32 = arith.addf %29, %31 : vector<16x1xf32>
    %33 = arith.negf %32 : vector<16x1xf32>
    %34 = math.exp %33 : vector<16x1xf32>
    %cst_19 = arith.constant 1.000000e+00 : f32
    %35 = vector.broadcast %cst_19 : f32 to vector<16x1xf32>
    %36 = arith.addf %35, %34 : vector<16x1xf32>
    %37 = arith.divf %35, %36 : vector<16x1xf32>
    %c0_20 = arith.constant 0 : index
    %c0_21 = arith.constant 0 : index
    %38 = vector.load %arg8[%c0_20, %c0_21] : memref<16x1xf32, #tpu.memory_space<vmem>>, vector<16x1xf32>
    tpu.vector_store %arg8[%c0_20, %c0_21], %37 {strides = array<i32>} : memref<16x1xf32, #tpu.memory_space<vmem>>, vector<16x1xf32>,
    return
  }
  func.func @transform_0(%arg0: i32) -> (i32, i32) {
    %c0_i32 = arith.constant 0 : i32
    %c0_i32_0 = arith.constant 0 : i32
    return %arg0, %c0_i32 : i32, i32
  }
  func.func @transform_1(%arg0: i32) -> (i32, i32) {
    %c0_i32 = arith.constant 0 : i32
    %c0_i32_0 = arith.constant 0 : i32
    %c0_i32_1 = arith.constant 0 : i32
    return %c0_i32, %c0_i32_0 : i32, i32
  }
  func.func @transform_2(%arg0: i32) -> (i32, i32) {
    %c0_i32 = arith.constant 0 : i32
    %c0_i32_0 = arith.constant 0 : i32
    %c0_i32_1 = arith.constant 0 : i32
    return %c0_i32, %c0_i32_0 : i32, i32
  }
  func.func @transform_3(%arg0: i32) -> (i32, i32) {
    %c0_i32 = arith.constant 0 : i32
    %c0_i32_0 = arith.constant 0 : i32
    %c0_i32_1 = arith.constant 0 : i32
    return %c0_i32, %c0_i32_0 : i32, i32
  }
  func.func @transform_4(%arg0: i32) -> (i32, i32) {
    %c0_i32 = arith.constant 0 : i32
    %c0_i32_0 = arith.constant 0 : i32
    %c0_i32_1 = arith.constant 0 : i32
    return %c0_i32, %c0_i32_0 : i32, i32
  }
  func.func @transform_5(%arg0: i32) -> (i32, i32) {
    %c0_i32 = arith.constant 0 : i32
    %c0_i32_0 = arith.constant 0 : i32
    %c0_i32_1 = arith.constant 0 : i32
    return %c0_i32, %c0_i32_0 : i32, i32
  }
  func.func @transform_6(%arg0: i32) -> (i32, i32) {
    %c0_i32 = arith.constant 0 : i32
    %c0_i32_0 = arith.constant 0 : i32
    %c0_i32_1 = arith.constant 0 : i32
    return %c0_i32, %c0_i32_0 : i32, i32
  }
  func.func @transform_7(%arg0: i32) -> (i32, i32) {
    %c0_i32 = arith.constant 0 : i32
    %c0_i32_0 = arith.constant 0 : i32
    return %arg0, %c0_i32 : i32, i32
  }
}

</mosaic_0001>

<llo_original>
// kernel: tpu_custom_call.1
$region0: #{tpu_custom_call.1}
  #allocation0 [shape = 'u32[]', space=smem, size = 0x4, offset = 0x4, fixed_abs, tag = 'smem constant byte address 0x4 - core index']
  #allocation1 [shape = 'u32[144,128]{1,0:T(1,128)}', space=vmem, size = 0x12000, scoped, tag = 'internal scratch']
  #allocation2 [shape = 'f32[1,1]{1,0:T(1,128)S(1)}', space=vmem, size = 0x200, scoped, tag = 'scoped memory for tpu_custom_call.1']
  %s0 = inlined_call_operand.hbm [shape: f32[16,15], index: 0, kind: input, shape index: {}]
  %s1 = inlined_call_operand.hbm [shape: bf16[15,512], index: 1, kind: input, shape index: {}]
  %s2 = inlined_call_operand.vmem [shape: bf16[1,512], index: 2, kind: input, shape index: {}]
  %s3 = inlined_call_operand.hbm [shape: bf16[512,256], index: 3, kind: input, shape index: {}]
  %s4 = inlined_call_operand.vmem [shape: bf16[1,256], index: 4, kind: input, shape index: {}]
  %s5 = inlined_call_operand.vmem [shape: bf16[1,256], index: 5, kind: input, shape index: {}]
  %s6 = inlined_call_operand.<no memory space> [shape: f32[1,1], index: 6, kind: input, shape index: {}]
  %s7 = inlined_call_operand.vmem [shape: f32[16,1], index: 7, kind: output, shape index: {}]
  %s8 = sld [smem:[#allocation0]]
  $region50: #{tpu_custom_call.1} parent=0
    _
  %s10 = ssub.s32 1, %s8
  %s11 = scalar_select 0, %s10, %s8
  %v12 = vstv %s6
  %13 = vst [vmem:[#allocation2] sm:$0x1] %v12
  $region1: #{tpu_custom_call.1} parent=0
    #allocation3 [shape = 'u8[8192]{0}', space=vmem, size = 0x2000, scoped, tag = 'input window, operand 0, single buffered']
    #allocation4 [shape = 's32[1]{0}', space=sflag, size = 0x4, scoped, tag = 'scoped memory for tpu_custom_call.1']
    #allocation5 [shape = 'u8[16384]{0}', space=vmem, size = 0x4000, scoped, tag = 'input window, operand 1, single buffered']
    #allocation6 [shape = 's32[1]{0}', space=sflag, size = 0x4, scoped, tag = 'scoped memory for tpu_custom_call.1']
    #allocation7 [shape = 'u8[262144]{0}', space=vmem, size = 0x40000, scoped, tag = 'input window, operand 3, single buffered']
    %14 = vsyncpa [#allocation4], 0
    %15 = vsyncpa [#allocation6], 0
    // Predicated region
    $region2: #{tpu_custom_call.1} parent=1 // pred_check
      _
    $region3: #{tpu_custom_call.1} parent=1 // pred_check_branch
      %17 = sbr.rel (0) target = $region5
    $region4: #{tpu_custom_call.1} parent=1 // pred_region
      %s19 = ssub.s32 256, 256
      %20 = vsyncadd [#allocation4], %s19
      %s21 = sshll.u32 [#allocation3], 4
      %s22 = int_to_ptr.vmem [resolvable:$true] %s21
      %27 = dma.hbm_to_vmem [thread:$0]  %s0, 256, %s22, [#allocation4], 128, 128, 8
    $region5: #{tpu_custom_call.1} parent=1 // pred_fallthru
      _
    // Predicated region
    $region6: #{tpu_custom_call.1} parent=1 // pred_check
      _
    $region7: #{tpu_custom_call.1} parent=1 // pred_check_branch
      %29 = sbr.rel (0) target = $region9
    $region8: #{tpu_custom_call.1} parent=1 // pred_region
      %s31 = ssub.s32 512, 512
      %32 = vsyncadd [#allocation6], %s31
      %s33 = sshll.u32 [#allocation5], 4
      %s34 = int_to_ptr.vmem [resolvable:$true] %s33
      %39 = dma.hbm_to_vmem [thread:$0]  %s1, 512, %s34, [#allocation6], 256, 256, 16
    $region9: #{tpu_custom_call.1} parent=1 // pred_fallthru
      _
    // Predicated region
    $region10: #{tpu_custom_call.1} parent=1 // pred_check
      _
    $region11: #{tpu_custom_call.1} parent=1 // pred_check_branch
      %41 = sbr.rel (0) target = $region13
    $region12: #{tpu_custom_call.1} parent=1 // pred_region
      _
    $region13: #{tpu_custom_call.1} parent=1 // pred_fallthru
      _
    // Predicated region
    $region14: #{tpu_custom_call.1} parent=1 // pred_check
      _
    $region15: #{tpu_custom_call.1} parent=1 // pred_check_branch
      %43 = sbr.rel (0) target = $region17
    $region16: #{tpu_custom_call.1} parent=1 // pred_region
      %s45 = ssub.s32 8192, 8192
      %46 = vsyncadd [#allocation6], %s45
      %s47 = sshll.u32 [#allocation7], 4
      %s48 = int_to_ptr.vmem [resolvable:$true] %s47
      %53 = dma.hbm_to_vmem [thread:$0]  %s3, 8192, %s48, [#allocation6], 128, 128, 8
    $region17: #{tpu_custom_call.1} parent=1 // pred_fallthru
      _
    // Predicated region
    $region18: #{tpu_custom_call.1} parent=1 // pred_check
      _
    $region19: #{tpu_custom_call.1} parent=1 // pred_check_branch
      %55 = sbr.rel (0) target = $region21
    $region20: #{tpu_custom_call.1} parent=1 // pred_region
      _
    $region21: #{tpu_custom_call.1} parent=1 // pred_fallthru
      _
    // Predicated region
    $region22: #{tpu_custom_call.1} parent=1 // pred_check
      _
    $region23: #{tpu_custom_call.1} parent=1 // pred_check_branch
      %57 = sbr.rel (0) target = $region25
    $region24: #{tpu_custom_call.1} parent=1 // pred_region
      _
    $region25: #{tpu_custom_call.1} parent=1 // pred_fallthru
      _
    // Predicated region
    $region26: #{tpu_custom_call.1} parent=1 // pred_check
      _
    $region27: #{tpu_custom_call.1} parent=1 // pred_check_branch
      %59 = sbr.rel (0) target = $region29
    $region28: #{tpu_custom_call.1} parent=1 // pred_region
      _
    $region29: #{tpu_custom_call.1} parent=1 // pred_fallthru
      _
    // Predicated region
    $region30: #{tpu_custom_call.1} parent=1 // pred_check
      _
    $region31: #{tpu_custom_call.1} parent=1 // pred_check_branch
      %61 = sbr.rel (0) target = $region33
    $region32: #{tpu_custom_call.1} parent=1 // pred_region
      %62 = dma.done [#allocation4], 256
    $region33: #{tpu_custom_call.1} parent=1 // pred_fallthru
      _
    // Predicated region
    $region34: #{tpu_custom_call.1} parent=1 // pred_check
      _
    $region35: #{tpu_custom_call.1} parent=1 // pred_check_branch
      %64 = sbr.rel (0) target = $region37
    $region36: #{tpu_custom_call.1} parent=1 // pred_region
      %65 = dma.done [#allocation6], 512
    $region37: #{tpu_custom_call.1} parent=1 // pred_fallthru
      _
    // Predicated region
    $region38: #{tpu_custom_call.1} parent=1 // pred_check
      _
    $region39: #{tpu_custom_call.1} parent=1 // pred_check_branch
      %67 = sbr.rel (0) target = $region41
    $region40: #{tpu_custom_call.1} parent=1 // pred_region
      %68 = dma.done [#allocation6], 8192
    $region41: #{tpu_custom_call.1} parent=1 // pred_fallthru
      _
    %v71 = vld [vmem:[#allocation3] sm:$0xff]
    %v72 = vld [vmem:[#allocation3 + $0x8] sm:$0xff]
    %v73 = vpack.c.bf16 %v72, %v71
    %v74 = vld [vmem:[#allocation5] sm:$0xff]
    %v75 = vld [vmem:[#allocation5 + $0x8] sm:$0xff]
    %v76 = vld [vmem:[#allocation5 + $0x10] sm:$0xff]
    %v77 = vld [vmem:[#allocation5 + $0x18] sm:$0xff]
    %v82 = vunpack.c.l.b16 %v74
    %v83 = vunpack.c.h.b16 %v74
    %v84 = vunpack.c.l.b16 %v75
    %v85 = vunpack.c.h.b16 %v75
    %v86 = vunpack.c.l.b16 %v76
    %v87 = vunpack.c.h.b16 %v76
    %v88 = vunpack.c.l.b16 %v77
    %v89 = vunpack.c.h.b16 %v77
    %v90 = vpack.c.b16 %v86, %v82
    %v91 = vpack.c.b16 %v87, %v83
    %v92 = vpack.c.b16 %v88, %v84
    %v93 = vpack.c.b16 %v89, %v85
    %vm94 = vcmask 121856
    %v96 = vsel %vm94, %v73, 0
    %vm98 = vcmask 1046528
    %vm99 = vcmask 1047552
    %v100 = vsel %vm98, 4294967295, 65535
    %v101 = vsel %vm99, %v100, 0
    %v103 = vand.u32 %v90, %v101
    %v106 = vand.u32 %v91, %v101
    %v109 = vand.u32 %v92, %v101
    %v112 = vand.u32 %v93, %v101
    %114 = vmatprep.subr.bf16.mxu0 %v106
    %115 = vmatpush1.bf16.msra.mxu0 %v103
    %116 = vmatprep.subr.bf16.mxu0 0
    %117 = vmatpush1.bf16.msra.mxu0 0
    %118 = vmatprep.subr.bf16.mxu0 0
    %119 = vmatpush1.bf16.msra.mxu0 0
    %120 = vmatprep.subr.bf16.mxu0 0
    %121 = vmatpush1.bf16.msra.mxu0 0
    %122 = vmatprep.subr.bf16.mxu0 0
    %123 = vmatpush1.bf16.msra.mxu0 0
    %124 = vmatprep.subr.bf16.mxu0 0
    %125 = vmatpush1.bf16.msra.mxu0 0
    %126 = vmatprep.subr.bf16.mxu0 0
    %127 = vmatpush1.bf16.msra.mxu0 0
    %128 = vmatprep.subr.bf16.mxu0 0
    %129 = vmatpush1.bf16.msra.mxu0 0
    %130 = vmatprep.subr.bf16.mxu0 0
    %131 = vmatpush1.bf16.msra.mxu0 0
    %132 = vmatprep.subr.bf16.mxu0 0
    %133 = vmatpush1.bf16.msra.mxu0 0
    %134 = vmatprep.subr.bf16.mxu0 0
    %135 = vmatpush1.bf16.msra.mxu0 0
    %136 = vmatprep.subr.bf16.mxu0 0
    %137 = vmatpush1.bf16.msra.mxu0 0
    %138 = vmatprep.subr.bf16.mxu0 0
    %139 = vmatpush1.bf16.msra.mxu0 0
    %140 = vmatprep.subr.bf16.mxu0 0
    %141 = vmatpush1.bf16.msra.mxu0 0
    %142 = vmatprep.subr.bf16.mxu0 0
    %143 = vmatpush1.bf16.msra.mxu0 0
    %144 = vmatprep.subr.bf16.mxu0 0
    %145 = vmatpush1.bf16.msra.mxu0 0
    %146 = vmatprep.mubr.bf16.mxu0 0
    %147 = vmatmul.mubr.bf16.gmra.mrb[0].mxu0 %v96
    %v148 = vpop.f32.mrb[0].mxu0
    %v149 = vadd.f32 0.0, %v148
    %v150 = vpop.f32.mrb[0].mxu0
    %v151 = vadd.f32 0.0, %v150
    %v152 = vpop.f32.mrb[0].mxu0
    %v153 = vadd.f32 0.0, %v152
    %v154 = vpop.f32.mrb[0].mxu0
    %v155 = vadd.f32 0.0, %v154
    %156 = vdwg.mxu0
    %157 = vmatprep.subr.bf16.mxu0 %v112
    %158 = vmatpush1.bf16.msra.mxu0 %v109
    %159 = vmatprep.subr.bf16.mxu0 0
    %160 = vmatpush1.bf16.msra.mxu0 0
    %161 = vmatprep.subr.bf16.mxu0 0
    %162 = vmatpush1.bf16.msra.mxu0 0
    %163 = vmatprep.subr.bf16.mxu0 0
    %164 = vmatpush1.bf16.msra.mxu0 0
    %165 = vmatprep.subr.bf16.mxu0 0
    %166 = vmatpush1.bf16.msra.mxu0 0
    %167 = vmatprep.subr.bf16.mxu0 0
    %168 = vmatpush1.bf16.msra.mxu0 0
    %169 = vmatprep.subr.bf16.mxu0 0
    %170 = vmatpush1.bf16.msra.mxu0 0
    %171 = vmatprep.subr.bf16.mxu0 0
    %172 = vmatpush1.bf16.msra.mxu0 0
    %173 = vmatprep.subr.bf16.mxu0 0
    %174 = vmatpush1.bf16.msra.mxu0 0
    %175 = vmatprep.subr.bf16.mxu0 0
    %176 = vmatpush1.bf16.msra.mxu0 0
    %177 = vmatprep.subr.bf16.mxu0 0
    %178 = vmatpush1.bf16.msra.mxu0 0
    %179 = vmatprep.subr.bf16.mxu0 0
    %180 = vmatpush1.bf16.msra.mxu0 0
    %181 = vmatprep.subr.bf16.mxu0 0
    %182 = vmatpush1.bf16.msra.mxu0 0
    %183 = vmatprep.subr.bf16.mxu0 0
    %184 = vmatpush1.bf16.msra.mxu0 0
    %185 = vmatprep.subr.bf16.mxu0 0
    %186 = vmatpush1.bf16.msra.mxu0 0
    %187 = vmatprep.subr.bf16.mxu0 0
    %188 = vmatpush1.bf16.msra.mxu0 0
    %189 = vmatprep.mubr.bf16.mxu0 0
    %190 = vmatmul.mubr.bf16.gmra.mrb[0].mxu0 %v96
    %v191 = vpop.f32.mrb[0].mxu0
    %v192 = vadd.f32 0.0, %v191
    %v193 = vpop.f32.mrb[0].mxu0
    %v194 = vadd.f32 0.0, %v193
    %v195 = vpop.f32.mrb[0].mxu0
    %v196 = vadd.f32 0.0, %v195
    %v197 = vpop.f32.mrb[0].mxu0
    %v198 = vadd.f32 0.0, %v197
    %199 = vdwg.mxu0
    %v200 = vpack.c.bf16 %v153, %v149
    %v201 = vpack.c.bf16 %v155, %v151
    %v202 = vpack.c.bf16 %v196, %v192
    %v203 = vpack.c.bf16 %v198, %v194
    %v204 = vld [vmem:[%s2] sm:$0xf]
    %v207 = vunpack.c.l.s4 1966171168
    %v208 = vunpack.c.0.s8 %v207
    %v209 = vlaneseq
    %v210 = vshrl.u32 %v209, 7
    %v211 = vsub.s32 %v208, %v210
    %v212 = vrot.slane %v204, %v211
    %v213 = vcombine.high %v212, %v212
    %v215 = vunpack.c.l.s4 1966171168
    %v216 = vunpack.c.0.s8 %v215
    %v217 = vlaneseq
    %v218 = vshrl.u32 %v217, 7
    %v219 = vsub.s32 %v216, %v218
    %v220 = vrot.slane %v212, %v219
    %v222 = vunpack.c.l.s4 1966171168
    %v223 = vunpack.c.0.s8 %v222
    %v224 = vlaneseq
    %v225 = vshrl.u32 %v224, 7
    %v226 = vsub.s32 %v223, %v225
    %v227 = vrot.slane %v213, %v226
    %v228 = vcombine.high %v220, %v220
    %v229 = vcombine.high %v227, %v227
    %v231 = vpack.i.b16 %v220, %v220
    %v233 = vlaneseq
    %v234 = vshrl.u32 %v233, 7
    %v235 = vsub.s32 0, %v234
    %v236 = vrot.slane %v231, %v235
    %v238 = vpack.i.b16 %v227, %v227
    %v240 = vlaneseq
    %v241 = vshrl.u32 %v240, 7
    %v242 = vsub.s32 0, %v241
    %v243 = vrot.slane %v238, %v242
    %v245 = vpack.i.b16 %v228, %v228
    %v247 = vlaneseq
    %v248 = vshrl.u32 %v247, 7
    %v249 = vsub.s32 0, %v248
    %v250 = vrot.slane %v245, %v249
    %v252 = vpack.i.b16 %v229, %v229
    %v254 = vlaneseq
    %v255 = vshrl.u32 %v254, 7
    %v256 = vsub.s32 0, %v255
    %v257 = vrot.slane %v252, %v256
    %v258 = vadd.bf16 %v200, %v236
    %v259 = vadd.bf16 %v201, %v243
    %v260 = vadd.bf16 %v202, %v250
    %v261 = vadd.bf16 %v203, %v257
    %vm262 = vcmp.gt.bf16.partialorder %v258, 0
    %vm263 = vcmp.gt.bf16.partialorder %v259, 0
    %vm264 = vcmp.gt.bf16.partialorder %v260, 0
    %vm265 = vcmp.gt.bf16.partialorder %v261, 0
    %v266 = vmul.bf16 %v258, 1009007652
    %v267 = vmul.bf16 %v259, 1009007652
    %v268 = vmul.bf16 %v260, 1009007652
    %v269 = vmul.bf16 %v261, 1009007652
    %v270 = vsel %vm262, %v258, %v266
    %v271 = vsel %vm263, %v259, %v267
    %v272 = vsel %vm264, %v260, %v268
    %v273 = vsel %vm265, %v261, %v269
    %v274 = vld [vmem:[#allocation7] sm:$0xff]
    %v275 = vld [vmem:[#allocation7 + $0x8] sm:$0xff]
    %v276 = vld [vmem:[#allocation7 + $0x10] sm:$0xff]
    %v277 = vld [vmem:[#allocation7 + $0x18] sm:$0xff]
    %v278 = vld [vmem:[#allocation7 + $0x20] sm:$0xff]
    %v279 = vld [vmem:[#allocation7 + $0x28] sm:$0xff]
    %v280 = vld [vmem:[#allocation7 + $0x30] sm:$0xff]
    %v281 = vld [vmem:[#allocation7 + $0x38] sm:$0xff]
    %v282 = vld [vmem:[#allocation7 + $0x40] sm:$0xff]
    %v283 = vld [vmem:[#allocation7 + $0x48] sm:$0xff]
    %v284 = vld [vmem:[#allocation7 + $0x50] sm:$0xff]
    %v285 = vld [vmem:[#allocation7 + $0x58] sm:$0xff]
    %v286 = vld [vmem:[#allocation7 + $0x60] sm:$0xff]
    %v287 = vld [vmem:[#allocation7 + $0x68] sm:$0xff]
    %v288 = vld [vmem:[#allocation7 + $0x70] sm:$0xff]
    %v289 = vld [vmem:[#allocation7 + $0x78] sm:$0xff]
    %v290 = vld [vmem:[#allocation7 + $0x80] sm:$0xff]
    %v291 = vld [vmem:[#allocation7 + $0x88] sm:$0xff]
    %v292 = vld [vmem:[#allocation7 + $0x90] sm:$0xff]
    %v293 = vld [vmem:[#allocation7 + $0x98] sm:$0xff]
    %v294 = vld [vmem:[#allocation7 + $0xa0] sm:$0xff]
    %v295 = vld [vmem:[#allocation7 + $0xa8] sm:$0xff]
    %v296 = vld [vmem:[#allocation7 + $0xb0] sm:$0xff]
    %v297 = vld [vmem:[#allocation7 + $0xb8] sm:$0xff]
    %v298 = vld [vmem:[#allocation7 + $0xc0] sm:$0xff]
    %v299 = vld [vmem:[#allocation7 + $0xc8] sm:$0xff]
    %v300 = vld [vmem:[#allocation7 + $0xd0] sm:$0xff]
    %v301 = vld [vmem:[#allocation7 + $0xd8] sm:$0xff]
    %v302 = vld [vmem:[#allocation7 + $0xe0] sm:$0xff]
    %v303 = vld [vmem:[#allocation7 + $0xe8] sm:$0xff]
    %v304 = vld [vmem:[#allocation7 + $0xf0] sm:$0xff]
    %v305 = vld [vmem:[#allocation7 + $0xf8] sm:$0xff]
    %v306 = vld [vmem:[#allocation7 + $0x100] sm:$0xff]
    %v307 = vld [vmem:[#allocation7 + $0x108] sm:$0xff]
    %v308 = vld [vmem:[#allocation7 + $0x110] sm:$0xff]
    %v309 = vld [vmem:[#allocation7 + $0x118] sm:$0xff]
    %v310 = vld [vmem:[#allocation7 + $0x120] sm:$0xff]
    %v311 = vld [vmem:[#allocation7 + $0x128] sm:$0xff]
    %v312 = vld [vmem:[#allocation7 + $0x130] sm:$0xff]
    %v313 = vld [vmem:[#allocation7 + $0x138] sm:$0xff]
    %v314 = vld [vmem:[#allocation7 + $0x140] sm:$0xff]
    %v315 = vld [vmem:[#allocation7 + $0x148] sm:$0xff]
    %v316 = vld [vmem:[#allocation7 + $0x150] sm:$0xff]
    %v317 = vld [vmem:[#allocation7 + $0x158] sm:$0xff]
    %v318 = vld [vmem:[#allocation7 + $0x160] sm:$0xff]
    %v319 = vld [vmem:[#allocation7 + $0x168] sm:$0xff]
    %v320 = vld [vmem:[#allocation7 + $0x170] sm:$0xff]
    %v321 = vld [vmem:[#allocation7 + $0x178] sm:$0xff]
    %v322 = vld [vmem:[#allocation7 + $0x180] sm:$0xff]
    %v323 = vld [vmem:[#allocation7 + $0x188] sm:$0xff]
    %v324 = vld [vmem:[#allocation7 + $0x190] sm:$0xff]
    %v325 = vld [vmem:[#allocation7 + $0x198] sm:$0xff]
    %v326 = vld [vmem:[#allocation7 + $0x1a0] sm:$0xff]
    %v327 = vld [vmem:[#allocation7 + $0x1a8] sm:$0xff]
    %v328 = vld [vmem:[#allocation7 + $0x1b0] sm:$0xff]
    %v329 = vld [vmem:[#allocation7 + $0x1b8] sm:$0xff]
    %v330 = vld [vmem:[#allocation7 + $0x1c0] sm:$0xff]
    %v331 = vld [vmem:[#allocation7 + $0x1c8] sm:$0xff]
    %v332 = vld [vmem:[#allocation7 + $0x1d0] sm:$0xff]
    %v333 = vld [vmem:[#allocation7 + $0x1d8] sm:$0xff]
    %v334 = vld [vmem:[#allocation7 + $0x1e0] sm:$0xff]
    %v335 = vld [vmem:[#allocation7 + $0x1e8] sm:$0xff]
    %v336 = vld [vmem:[#allocation7 + $0x1f0] sm:$0xff]
    %v337 = vld [vmem:[#allocation7 + $0x1f8] sm:$0xff]
    %v402 = vunpack.c.l.b16 %v274
    %v403 = vunpack.c.h.b16 %v274
    %v404 = vunpack.c.l.b16 %v275
    %v405 = vunpack.c.h.b16 %v275
    %v406 = vunpack.c.l.b16 %v276
    %v407 = vunpack.c.h.b16 %v276
    %v408 = vunpack.c.l.b16 %v277
    %v409 = vunpack.c.h.b16 %v277
    %v410 = vunpack.c.l.b16 %v278
    %v411 = vunpack.c.h.b16 %v278
    %v412 = vunpack.c.l.b16 %v279
    %v413 = vunpack.c.h.b16 %v279
    %v414 = vunpack.c.l.b16 %v280
    %v415 = vunpack.c.h.b16 %v280
    %v416 = vunpack.c.l.b16 %v281
    %v417 = vunpack.c.h.b16 %v281
    %v418 = vunpack.c.l.b16 %v282
    %v419 = vunpack.c.h.b16 %v282
    %v420 = vunpack.c.l.b16 %v283
    %v421 = vunpack.c.h.b16 %v283
    %v422 = vunpack.c.l.b16 %v284
    %v423 = vunpack.c.h.b16 %v284
    %v424 = vunpack.c.l.b16 %v285
    %v425 = vunpack.c.h.b16 %v285
    %v426 = vunpack.c.l.b16 %v286
    %v427 = vunpack.c.h.b16 %v286
    %v428 = vunpack.c.l.b16 %v287
    %v429 = vunpack.c.h.b16 %v287
    %v430 = vunpack.c.l.b16 %v288
    %v431 = vunpack.c.h.b16 %v288
    %v432 = vunpack.c.l.b16 %v289
    %v433 = vunpack.c.h.b16 %v289
    %v434 = vunpack.c.l.b16 %v290
    %v435 = vunpack.c.h.b16 %v290
    %v436 = vunpack.c.l.b16 %v291
    %v437 = vunpack.c.h.b16 %v291
    %v438 = vunpack.c.l.b16 %v292
    %v439 = vunpack.c.h.b16 %v292
    %v440 = vunpack.c.l.b16 %v293
    %v441 = vunpack.c.h.b16 %v293
    %v442 = vunpack.c.l.b16 %v294
    %v443 = vunpack.c.h.b16 %v294
    %v444 = vunpack.c.l.b16 %v295
    %v445 = vunpack.c.h.b16 %v295
    %v446 = vunpack.c.l.b16 %v296
    %v447 = vunpack.c.h.b16 %v296
    %v448 = vunpack.c.l.b16 %v297
    %v449 = vunpack.c.h.b16 %v297
    %v450 = vunpack.c.l.b16 %v298
    %v451 = vunpack.c.h.b16 %v298
    %v452 = vunpack.c.l.b16 %v299
    %v453 = vunpack.c.h.b16 %v299
    %v454 = vunpack.c.l.b16 %v300
    %v455 = vunpack.c.h.b16 %v300
    %v456 = vunpack.c.l.b16 %v301
    %v457 = vunpack.c.h.b16 %v301
    %v458 = vunpack.c.l.b16 %v302
    %v459 = vunpack.c.h.b16 %v302
    %v460 = vunpack.c.l.b16 %v303
    %v461 = vunpack.c.h.b16 %v303
    %v462 = vunpack.c.l.b16 %v304
    %v463 = vunpack.c.h.b16 %v304
    %v464 = vunpack.c.l.b16 %v305
    %v465 = vunpack.c.h.b16 %v305
    %v466 = vunpack.c.l.b16 %v306
    %v467 = vunpack.c.h.b16 %v306
    %v468 = vunpack.c.l.b16 %v307
    %v469 = vunpack.c.h.b16 %v307
    %v470 = vunpack.c.l.b16 %v308
    %v471 = vunpack.c.h.b16 %v308
    %v472 = vunpack.c.l.b16 %v309
    %v473 = vunpack.c.h.b16 %v309
    %v474 = vunpack.c.l.b16 %v310
    %v475 = vunpack.c.h.b16 %v310
    %v476 = vunpack.c.l.b16 %v311
    %v477 = vunpack.c.h.b16 %v311
    %v478 = vunpack.c.l.b16 %v312
    %v479 = vunpack.c.h.b16 %v312
    %v480 = vunpack.c.l.b16 %v313
    %v481 = vunpack.c.h.b16 %v313
    %v482 = vunpack.c.l.b16 %v314
    %v483 = vunpack.c.h.b16 %v314
    %v484 = vunpack.c.l.b16 %v315
    %v485 = vunpack.c.h.b16 %v315
    %v486 = vunpack.c.l.b16 %v316
    %v487 = vunpack.c.h.b16 %v316
    %v488 = vunpack.c.l.b16 %v317
    %v489 = vunpack.c.h.b16 %v317
    %v490 = vunpack.c.l.b16 %v318
    %v491 = vunpack.c.h.b16 %v318
    %v492 = vunpack.c.l.b16 %v319
    %v493 = vunpack.c.h.b16 %v319
    %v494 = vunpack.c.l.b16 %v320
    %v495 = vunpack.c.h.b16 %v320
    %v496 = vunpack.c.l.b16 %v321
    %v497 = vunpack.c.h.b16 %v321
    %v498 = vunpack.c.l.b16 %v322
    %v499 = vunpack.c.h.b16 %v322
    %v500 = vunpack.c.l.b16 %v323
    %v501 = vunpack.c.h.b16 %v323
    %v502 = vunpack.c.l.b16 %v324
    %v503 = vunpack.c.h.b16 %v324
    %v504 = vunpack.c.l.b16 %v325
    %v505 = vunpack.c.h.b16 %v325
    %v506 = vunpack.c.l.b16 %v326
    %v507 = vunpack.c.h.b16 %v326
    %v508 = vunpack.c.l.b16 %v327
    %v509 = vunpack.c.h.b16 %v327
    %v510 = vunpack.c.l.b16 %v328
    %v511 = vunpack.c.h.b16 %v328
    %v512 = vunpack.c.l.b16 %v329
    %v513 = vunpack.c.h.b16 %v329
    %v514 = vunpack.c.l.b16 %v330
    %v515 = vunpack.c.h.b16 %v330
    %v516 = vunpack.c.l.b16 %v331
    %v517 = vunpack.c.h.b16 %v331
    %v518 = vunpack.c.l.b16 %v332
    %v519 = vunpack.c.h.b16 %v332
    %v520 = vunpack.c.l.b16 %v333
    %v521 = vunpack.c.h.b16 %v333
    %v522 = vunpack.c.l.b16 %v334
    %v523 = vunpack.c.h.b16 %v334
    %v524 = vunpack.c.l.b16 %v335
    %v525 = vunpack.c.h.b16 %v335
    %v526 = vunpack.c.l.b16 %v336
    %v527 = vunpack.c.h.b16 %v336
    %v528 = vunpack.c.l.b16 %v337
    %v529 = vunpack.c.h.b16 %v337
    %v530 = vpack.c.b16 %v404, %v402
    %v531 = vpack.c.b16 %v405, %v403
    %v532 = vpack.c.b16 %v408, %v406
    %v533 = vpack.c.b16 %v409, %v407
    %v534 = vpack.c.b16 %v412, %v410
    %v535 = vpack.c.b16 %v413, %v411
    %v536 = vpack.c.b16 %v416, %v414
    %v537 = vpack.c.b16 %v417, %v415
    %v538 = vpack.c.b16 %v420, %v418
    %v539 = vpack.c.b16 %v421, %v419
    %v540 = vpack.c.b16 %v424, %v422
    %v541 = vpack.c.b16 %v425, %v423
    %v542 = vpack.c.b16 %v428, %v426
    %v543 = vpack.c.b16 %v429, %v427
    %v544 = vpack.c.b16 %v432, %v430
    %v545 = vpack.c.b16 %v433, %v431
    %v546 = vpack.c.b16 %v436, %v434
    %v547 = vpack.c.b16 %v437, %v435
    %v548 = vpack.c.b16 %v440, %v438
    %v549 = vpack.c.b16 %v441, %v439
    %v550 = vpack.c.b16 %v444, %v442
    %v551 = vpack.c.b16 %v445, %v443
    %v552 = vpack.c.b16 %v448, %v446
    %v553 = vpack.c.b16 %v449, %v447
    %v554 = vpack.c.b16 %v452, %v450
    %v555 = vpack.c.b16 %v453, %v451
    %v556 = vpack.c.b16 %v456, %v454
    %v557 = vpack.c.b16 %v457, %v455
    %v558 = vpack.c.b16 %v460, %v458
    %v559 = vpack.c.b16 %v461, %v459
    %v560 = vpack.c.b16 %v464, %v462
    %v561 = vpack.c.b16 %v465, %v463
    %v562 = vpack.c.b16 %v468, %v466
    %v563 = vpack.c.b16 %v469, %v467
    %v564 = vpack.c.b16 %v472, %v470
    %v565 = vpack.c.b16 %v473, %v471
    %v566 = vpack.c.b16 %v476, %v474
    %v567 = vpack.c.b16 %v477, %v475
    %v568 = vpack.c.b16 %v480, %v478
    %v569 = vpack.c.b16 %v481, %v479
    %v570 = vpack.c.b16 %v484, %v482
    %v571 = vpack.c.b16 %v485, %v483
    %v572 = vpack.c.b16 %v488, %v486
    %v573 = vpack.c.b16 %v489, %v487
    %v574 = vpack.c.b16 %v492, %v490
    %v575 = vpack.c.b16 %v493, %v491
    %v576 = vpack.c.b16 %v496, %v494
    %v577 = vpack.c.b16 %v497, %v495
    %v578 = vpack.c.b16 %v500, %v498
    %v579 = vpack.c.b16 %v501, %v499
    %v580 = vpack.c.b16 %v504, %v502
    %v581 = vpack.c.b16 %v505, %v503
    %v582 = vpack.c.b16 %v508, %v506
    %v583 = vpack.c.b16 %v509, %v507
    %v584 = vpack.c.b16 %v512, %v510
    %v585 = vpack.c.b16 %v513, %v511
    %v586 = vpack.c.b16 %v516, %v514
    %v587 = vpack.c.b16 %v517, %v515
    %v588 = vpack.c.b16 %v520, %v518
    %v589 = vpack.c.b16 %v521, %v519
    %v590 = vpack.c.b16 %v524, %v522
    %v591 = vpack.c.b16 %v525, %v523
    %v592 = vpack.c.b16 %v528, %v526
    %v593 = vpack.c.b16 %v529, %v527
    %658 = vmatprep.subr.bf16.mxu0 %v531
    %659 = vmatpush1.bf16.msra.mxu0 %v530
    %660 = vmatprep.subr.bf16.mxu0 %v533
    %661 = vmatpush1.bf16.msra.mxu0 %v532
    %662 = vmatprep.subr.bf16.mxu0 %v535
    %663 = vmatpush1.bf16.msra.mxu0 %v534
    %664 = vmatprep.subr.bf16.mxu0 %v537
    %665 = vmatpush1.bf16.msra.mxu0 %v536
    %666 = vmatprep.subr.bf16.mxu0 %v539
    %667 = vmatpush1.bf16.msra.mxu0 %v538
    %668 = vmatprep.subr.bf16.mxu0 %v541
    %669 = vmatpush1.bf16.msra.mxu0 %v540
    %670 = vmatprep.subr.bf16.mxu0 %v543
    %671 = vmatpush1.bf16.msra.mxu0 %v542
    %672 = vmatprep.subr.bf16.mxu0 %v545
    %673 = vmatpush1.bf16.msra.mxu0 %v544
    %674 = vmatprep.subr.bf16.mxu0 %v547
    %675 = vmatpush1.bf16.msra.mxu0 %v546
    %676 = vmatprep.subr.bf16.mxu0 %v549
    %677 = vmatpush1.bf16.msra.mxu0 %v548
    %678 = vmatprep.subr.bf16.mxu0 %v551
    %679 = vmatpush1.bf16.msra.mxu0 %v550
    %680 = vmatprep.subr.bf16.mxu0 %v553
    %681 = vmatpush1.bf16.msra.mxu0 %v552
    %682 = vmatprep.subr.bf16.mxu0 %v555
    %683 = vmatpush1.bf16.msra.mxu0 %v554
    %684 = vmatprep.subr.bf16.mxu0 %v557
    %685 = vmatpush1.bf16.msra.mxu0 %v556
    %686 = vmatprep.subr.bf16.mxu0 %v559
    %687 = vmatpush1.bf16.msra.mxu0 %v558
    %688 = vmatprep.subr.bf16.mxu0 %v561
    %689 = vmatpush1.bf16.msra.mxu0 %v560
    %690 = vmatprep.mubr.bf16.mxu0 %v271
    %691 = vmatmul.mubr.bf16.gmra.mrb[0].mxu0 %v270
    %v692 = vpop.f32.mrb[0].mxu0
    %v693 = vadd.f32 0.0, %v692
    %v694 = vpop.f32.mrb[0].mxu0
    %v695 = vadd.f32 0.0, %v694
    %v696 = vpop.f32.mrb[0].mxu0
    %v697 = vadd.f32 0.0, %v696
    %v698 = vpop.f32.mrb[0].mxu0
    %v699 = vadd.f32 0.0, %v698
    %700 = vdwg.mxu0
    %701 = vmatprep.subr.bf16.mxu0 %v563
    %702 = vmatpush1.bf16.msra.mxu0 %v562
    %703 = vmatprep.subr.bf16.mxu0 %v565
    %704 = vmatpush1.bf16.msra.mxu0 %v564
    %705 = vmatprep.subr.bf16.mxu0 %v567
    %706 = vmatpush1.bf16.msra.mxu0 %v566
    %707 = vmatprep.subr.bf16.mxu0 %v569
    %708 = vmatpush1.bf16.msra.mxu0 %v568
    %709 = vmatprep.subr.bf16.mxu0 %v571
    %710 = vmatpush1.bf16.msra.mxu0 %v570
    %711 = vmatprep.subr.bf16.mxu0 %v573
    %712 = vmatpush1.bf16.msra.mxu0 %v572
    %713 = vmatprep.subr.bf16.mxu0 %v575
    %714 = vmatpush1.bf16.msra.mxu0 %v574
    %715 = vmatprep.subr.bf16.mxu0 %v577
    %716 = vmatpush1.bf16.msra.mxu0 %v576
    %717 = vmatprep.subr.bf16.mxu0 %v579
    %718 = vmatpush1.bf16.msra.mxu0 %v578
    %719 = vmatprep.subr.bf16.mxu0 %v581
    %720 = vmatpush1.bf16.msra.mxu0 %v580
    %721 = vmatprep.subr.bf16.mxu0 %v583
    %722 = vmatpush1.bf16.msra.mxu0 %v582
    %723 = vmatprep.subr.bf16.mxu0 %v585
    %724 = vmatpush1.bf16.msra.mxu0 %v584
    %725 = vmatprep.subr.bf16.mxu0 %v587
    %726 = vmatpush1.bf16.msra.mxu0 %v586
    %727 = vmatprep.subr.bf16.mxu0 %v589
    %728 = vmatpush1.bf16.msra.mxu0 %v588
    %729 = vmatprep.subr.bf16.mxu0 %v591
    %730 = vmatpush1.bf16.msra.mxu0 %v590
    %731 = vmatprep.subr.bf16.mxu0 %v593
    %732 = vmatpush1.bf16.msra.mxu0 %v592
    %733 = vmatprep.mubr.bf16.mxu0 %v273
    %734 = vmatmul.mubr.bf16.gmra.mrb[0].mxu0 %v272
    %v735 = vpop.f32.mrb[0].mxu0
    %v736 = vadd.f32 %v693, %v735
    %v737 = vpop.f32.mrb[0].mxu0
    %v738 = vadd.f32 %v695, %v737
    %v739 = vpop.f32.mrb[0].mxu0
    %v740 = vadd.f32 %v697, %v739
    %v741 = vpop.f32.mrb[0].mxu0
    %v742 = vadd.f32 %v699, %v741
    %743 = vdwg.mxu0
    %v744 = vpack.c.bf16 %v740, %v736
    %v745 = vpack.c.bf16 %v742, %v738
    %v746 = vld [vmem:[%s4] sm:$0x3]
    %v749 = vunpack.c.l.s4 1966171168
    %v750 = vunpack.c.0.s8 %v749
    %v751 = vlaneseq
    %v752 = vshrl.u32 %v751, 7
    %v753 = vsub.s32 %v750, %v752
    %v754 = vrot.slane %v746, %v753
    %v755 = vcombine.high %v754, %v754
    %v757 = vunpack.c.l.s4 1966171168
    %v758 = vunpack.c.0.s8 %v757
    %v759 = vlaneseq
    %v760 = vshrl.u32 %v759, 7
    %v761 = vsub.s32 %v758, %v760
    %v762 = vrot.slane %v754, %v761
    %v764 = vunpack.c.l.s4 1966171168
    %v765 = vunpack.c.0.s8 %v764
    %v766 = vlaneseq
    %v767 = vshrl.u32 %v766, 7
    %v768 = vsub.s32 %v765, %v767
    %v769 = vrot.slane %v755, %v768
    %v771 = vpack.i.b16 %v762, %v762
    %v773 = vlaneseq
    %v774 = vshrl.u32 %v773, 7
    %v775 = vsub.s32 0, %v774
    %v776 = vrot.slane %v771, %v775
    %v778 = vpack.i.b16 %v769, %v769
    %v780 = vlaneseq
    %v781 = vshrl.u32 %v780, 7
    %v782 = vsub.s32 0, %v781
    %v783 = vrot.slane %v778, %v782
    %v784 = vadd.bf16 %v744, %v776
    %v785 = vadd.bf16 %v745, %v783
    %vm786 = vcmp.gt.bf16.partialorder %v784, 0
    %vm787 = vcmp.gt.bf16.partialorder %v785, 0
    %v788 = vmul.bf16 %v784, 1009007652
    %v789 = vmul.bf16 %v785, 1009007652
    %v790 = vsel %vm786, %v784, %v788
    %v791 = vsel %vm787, %v785, %v789
    %v792 = vld [vmem:[%s5] sm:$0x3]
    %v795 = vunpack.c.l.s4 1966171168
    %v796 = vunpack.c.0.s8 %v795
    %v797 = vlaneseq
    %v798 = vshrl.u32 %v797, 7
    %v799 = vsub.s32 %v796, %v798
    %v800 = vrot.slane %v792, %v799
    %v801 = vcombine.high %v800, %v800
    %v803 = vunpack.c.l.s4 1966171168
    %v804 = vunpack.c.0.s8 %v803
    %v805 = vlaneseq
    %v806 = vshrl.u32 %v805, 7
    %v807 = vsub.s32 %v804, %v806
    %v808 = vrot.slane %v800, %v807
    %v810 = vunpack.c.l.s4 1966171168
    %v811 = vunpack.c.0.s8 %v810
    %v812 = vlaneseq
    %v813 = vshrl.u32 %v812, 7
    %v814 = vsub.s32 %v811, %v813
    %v815 = vrot.slane %v801, %v814
    %v817 = vpack.i.b16 %v808, %v808
    %v819 = vlaneseq
    %v820 = vshrl.u32 %v819, 7
    %v821 = vsub.s32 0, %v820
    %v822 = vrot.slane %v817, %v821
    %v824 = vpack.i.b16 %v815, %v815
    %v826 = vlaneseq
    %v827 = vshrl.u32 %v826, 7
    %v828 = vsub.s32 0, %v827
    %v829 = vrot.slane %v824, %v828
    %v830 = vmul.bf16 %v790, %v822
    %v831 = vmul.bf16 %v791, %v829
    %v832 = vunpack.c.l.bf16 %v830
    %v833 = vunpack.c.l.bf16 %v831
    %v834 = vunpack.c.h.bf16 %v830
    %v835 = vunpack.c.h.bf16 %v831
    %v836 = vadd.f32 %v832, %v833
    %837 = vadd.xlane.f32.xlu0 %v836
    %v838 = vpop.xlane.xlu0 %837
    %v839 = vadd.f32 %v834, %v835
    %840 = vadd.xlane.f32.xlu0 %v839
    %v841 = vpop.xlane.xlu0 %840
    %v842 = vld [vmem:[#allocation2] sm:$0x1]
    %v844 = vlaneseq
    %v845 = vshrl.u32 %v844, 7
    %v846 = vsub.s32 0, %v845
    %v847 = vrot.slane %v842, %v846
    %v849 = vadd.f32 %v838, %v847
    %v850 = vadd.f32 %v841, %v847
    %v851 = vxor.u32 %v849, 2147483648
    %v852 = vxor.u32 %v850, 2147483648
    %v853 = vmul.f32 %v851, 1.442695
    %v854 = vpow.pop %v853
    %v855 = vmul.f32 %v852, 1.442695
    %v856 = vpow.pop %v855
    %v857 = vadd.f32 %v854, 1.0
    %v858 = vadd.f32 %v856, 1.0
    %v859 = vrcp.pop %v857
    %v860 = vmul.f32 1.0, %v859
    %v861 = vrcp.pop %v858
    %v862 = vmul.f32 1.0, %v861
    %vm863 = vcmask 7168
    %864 = vst.msk [vmem:[%s7] sm:$0xff] %vm863, %v860
    %865 = vst.msk [vmem:[%s7 + $0x8] sm:$0xff] %vm863, %v862
    // Predicated region
    $region42: #{tpu_custom_call.1} parent=1 // pred_check
      _
    $region43: #{tpu_custom_call.1} parent=1 // pred_check_branch
      %867 = sbr.rel (0) target = $region45
    $region44: #{tpu_custom_call.1} parent=1 // pred_region
      _
    $region45: #{tpu_custom_call.1} parent=1 // pred_fallthru
      _
    // Predicated region
    $region46: #{tpu_custom_call.1} parent=1 // pred_check
      _
    $region47: #{tpu_custom_call.1} parent=1 // pred_check_branch
      %869 = sbr.rel (0) target = $region49
    $region48: #{tpu_custom_call.1} parent=1 // pred_region
      _
    $region49: #{tpu_custom_call.1} parent=1 // pred_fallthru
      _
    %870 = vsyncpa [#allocation4], 1
    %871 = vsyncpa [#allocation6], 1

</llo_original>
